<compile_context>
chip_gen: v7x
topology: tpu7x:2x2x1
jax: 0.10.0
libtpu: 0.0.40
codegen_flags: <defaults>
</compile_context>

<pallas_src>
import jax
import jax.numpy as jnp
import numpy as np
from jax import lax
from jax.experimental import pallas as pl
from jax.experimental.pallas import tpu as pltpu

EPS = 1e-5


def _fused_gates_kernel(x_ref, w1_ref, b1_ref, w2_ref, b2_ref, o_ref, h_vmem):
    """One batch element, all enabled gates fused.

    x_ref : (1, Cin, L)     input row for this grid step (bf16 or f32)
    w1_ref: (GC, kmax*Cin)  BN-folded conv1 weights, tap-major "im2col" layout
    b1_ref: (GC, 1)         BN-folded conv1 bias (f32)
    w2_ref: (GC, 3)         BN-folded conv2 weights (f32)
    b2_ref: (G, 1)          BN-folded conv2 bias (f32)
    o_ref : (1, G, L)       combined per-gate outputs, L on lanes (f32)
    h_vmem: (GC, L+2)       f32 scratch for masked conv1 activations
    """
    Cin, L = x_ref.shape[1], x_ref.shape[2]
    GC, KC = w1_ref.shape
    kmax = KC // Cin
    Pmax = kmax // 2 + 1          # conv1 'same' halo + 1 extra col for conv2's 'same'
    G = o_ref.shape[1]
    Cmid = GC // G
    R1 = L + 2                    # conv1 columns: positions -1 .. L (invariant of Pmax)

    # ---- build the 'same' halo in-kernel (no extra HBM pad/transpose pass) ----
    x = x_ref[0]                                               # (Cin, L)
    zpad = jnp.zeros((Cin, Pmax), x.dtype)
    xp = jnp.concatenate([zpad, x, zpad], axis=1)              # (Cin, L + kmax + 1)

    # ---- conv1 for ALL gates: a single big-K MXU dot over an im2col slab ----
    xim = jnp.concatenate([xp[:, dk:dk + R1] for dk in range(kmax)], axis=0)
    acc1 = jnp.dot(w1_ref[...], xim, preferred_element_type=jnp.float32)   # (GC, R1)

    # Columns 0 and L+1 are conv2's 'same' zero padding -> force exactly to zero.
    col = lax.broadcasted_iota(jnp.int32, (1, R1), 1)
    interior = (col >= 1) & (col <= L)                         # O(1) compares, (1, R1)
    h_vmem[...] = jnp.where(interior,
                            jnp.maximum(acc1 + b1_ref[...], 0.0), 0.0)

    # ---- conv2 (Cmid -> 1, k=3) on the VPU, shifted reads from VMEM-staged h ----
    acc2 = h_vmem[:, 0:L] * w2_ref[:, 0:1]
    for t in (1, 2):
        acc2 = acc2 + h_vmem[:, t:t + L] * w2_ref[:, t:t + 1]

    # grouped per-gate channel reduction + bias + ReLU, single lane-dense store
    y = jnp.sum(acc2.reshape(G, Cmid, L), axis=1)              # (G, L)
    o_ref[0] = jnp.maximum(y + b2_ref[...], 0.0)


def convnet_path_forward(x_ncl, all_params, kernel_sizes, gate_flags,
                         *, compute_dtype=jnp.bfloat16):
    """ConvNetPath.forward: list of enabled gate outputs, each (N, 1, L)."""
    enabled = [(p, k) for p, k, f in zip(all_params, kernel_sizes, gate_flags) if f]
    if not enabled:
        return []

    N, Cin, L = x_ncl.shape
    G = len(enabled)
    kmax = max(k for _, k in enabled)
    assert kmax % 2 == 1, "only odd kernel sizes supported"
    # TODO(synk): PyTorch padding='same' with even kernels pads asymmetrically; not implemented.
    Cmid = enabled[0][0][0].shape[0]
    Pmax = kmax // 2 + 1
    R1 = L + 2
    # Invariant the whole column scheme relies on: Pmax = kmax//2 + 1 so the last
    # conv1 column is exactly position L (conv2's right zero pad).
    assert (L + 2 * Pmax) - (kmax - 1) == R1

    # Fold eval-mode BatchNorm into the convs; pad taps to kmax; fuse all gates.
    W1p, B1p, W2p, B2p = [], [], [], []
    for params, k in enabled:
        (w1_t, b1, g1, be1, m1, v1, w2_t, b2, g2, be2, m2, v2) = params
        assert k % 2 == 1 and w1_t.shape[0] == Cmid
        a1 = g1 / jnp.sqrt(v1 + EPS)                                   # (Cmid,)
        w1 = jnp.transpose(w1_t, (2, 0, 1)) * a1[None, :, None]        # (k, Cmid, Cin)
        off = (kmax - k) // 2
        w1 = jnp.pad(w1, ((off, kmax - k - off), (0, 0), (0, 0)))      # (kmax, Cmid, Cin)
        a2 = g2 / jnp.sqrt(v2 + EPS)                                   # (1,)
        W1p.append(w1)
        B1p.append(a1 * (b1 - m1) + be1)                               # (Cmid,)
        W2p.append(w2_t[0] * a2[0])                                    # (Cmid, 3)
        B2p.append(a2 * (b2 - m2) + be2)                               # (1,)

    GC = G * Cmid
    W1 = jnp.concatenate(W1p, axis=1)                                  # (kmax, GC, Cin)
    # tap-major im2col layout for the single big-K conv1 dot: (GC, kmax*Cin)
    W1im = jnp.transpose(W1, (1, 0, 2)).reshape(GC, kmax * Cin).astype(compute_dtype)
    B1 = jnp.concatenate(B1p, axis=0)[:, None].astype(jnp.float32)     # (GC, 1)
    W2 = jnp.concatenate(W2p, axis=0).astype(jnp.float32)              # (GC, 3)
    B2 = jnp.concatenate(B2p, axis=0)[:, None].astype(jnp.float32)     # (G, 1)
    x_in = x_ncl.astype(compute_dtype)                                 # no pad / no transpose

    isz = jnp.dtype(compute_dtype).itemsize
    cost = pl.CostEstimate(
        flops=int(N * (2 * GC * kmax * Cin * R1 + 7 * GC * L + 2 * G * L)),
        transcendentals=0,
        bytes_accessed=int(isz * (x_in.size + W1im.size)
                           + 4 * (B1.size + W2.size + B2.size + N * G * L)))

    # TODO(synk): at production L, add a second grid axis over L tiles (lane width a
    # multiple of 128), size blocks for v7x's 64 MiB VMEM (or raise vmem_limit_bytes),
    # and use pipeline_mode=pl.Buffered(3) on the x BlockSpec for v6e headroom.
    out = pl.pallas_call(
        _fused_gates_kernel,
        out_shape=jax.ShapeDtypeStruct((N, G, L), jnp.float32),
        grid=(N,),
        in_specs=[
            pl.BlockSpec((1, Cin, L), lambda n: (n, 0, 0)),            # one batch row / step
            pl.BlockSpec((GC, kmax * Cin), lambda n: (0, 0)),          # weights stay resident
            pl.BlockSpec((GC, 1), lambda n: (0, 0)),
            pl.BlockSpec((GC, 3), lambda n: (0, 0)),
            pl.BlockSpec((G, 1), lambda n: (0, 0)),
        ],
        out_specs=pl.BlockSpec((1, G, L), lambda n: (n, 0, 0)),        # one combined output
        scratch_shapes=[pltpu.VMEM((GC, R1), jnp.float32)],            # staged conv1 activations
        compiler_params=pltpu.CompilerParams(
            dimension_semantics=("parallel",)),                        # batch split across TCs
        cost_estimate=cost,
    )(x_in, W1im, B1, W2, B2)

    # Cheap wrapper slices; matches PyTorch's list of (N, 1, L) gate outputs.
    return [out[:, g:g + 1, :] for g in range(G)]


def init_gate_params(key, in_channels, intermediate_channels, k):
    """Deterministic synthetic parameters, PyTorch layouts."""
    ks = jax.random.split(key, 8)
    w1 = 0.1 * jax.random.normal(ks[0], (intermediate_channels, in_channels, k), jnp.float32)
    b1 = 0.1 * jax.random.normal(ks[1], (intermediate_channels,), jnp.float32)
    g1 = 1.0 + 0.1 * jax.random.normal(ks[2], (intermediate_channels,), jnp.float32)
    be1 = 0.1 * jax.random.normal(ks[3], (intermediate_channels,), jnp.float32)
    m1 = 0.1 * jax.random.normal(ks[4], (intermediate_channels,), jnp.float32)
    v1 = jax.random.uniform(ks[5], (intermediate_channels,), jnp.float32, 0.5, 1.5)
    w2 = 0.1 * jax.random.normal(ks[6], (1, intermediate_channels, 3), jnp.float32)
    b2 = 0.1 * jax.random.normal(ks[7], (1,), jnp.float32)
    g2 = jnp.ones((1,), jnp.float32)
    be2 = jnp.zeros((1,), jnp.float32)
    m2 = jnp.zeros((1,), jnp.float32)
    v2 = jnp.ones((1,), jnp.float32)
    return (w1, b1, g1, be1, m1, v1, w2, b2, g2, be2, m2, v2)


# ---- pure-JAX reference (for correctness check only) ----
def gate_reference(x_ncl, params, k):
    (w1_t, b1, g1, be1, m1, v1, w2_t, b2, g2, be2, m2, v2) = params

    def conv1d_same(x, w, b):
        p = w.shape[-1] // 2
        y = lax.conv_general_dilated(x, w, window_strides=(1,), padding=[(p, p)],
                                     dimension_numbers=("NCH", "OIH", "NCH"))
        return y + b[None, :, None]

    def bn(x, g, be, m, v):
        return (g[None, :, None] * (x - m[None, :, None])
                / jnp.sqrt(v[None, :, None] + EPS) + be[None, :, None])

    h = jax.nn.relu(bn(conv1d_same(x_ncl, w1_t, b1), g1, be1, m1, v1))
    return jax.nn.relu(bn(conv1d_same(h, w2_t, b2), g2, be2, m2, v2))


if __name__ == "__main__":
    N, Cin, Cmid, L = 2, 4, 8, 16
    kernel_sizes = (3, 5, 7)
    gate_flags = (True, True, True)   # config.{small,medium,large}_gate (static flags)

    key = jax.random.PRNGKey(0)
    kx, k0, k1, k2 = jax.random.split(key, 4)
    x = jax.random.normal(kx, (N, Cin, L), jnp.float32)   # PyTorch NCL input

    all_params = [init_gate_params(kg, Cin, Cmid, ks)
                  for kg, ks in zip((k0, k1, k2), kernel_sizes)]
    enabled = [(p, ks) for p, ks, f in zip(all_params, kernel_sizes, gate_flags) if f]

    # f32 operand path: validates the kernel math tightly against the reference.
    outs = convnet_path_forward(x, all_params, kernel_sizes, gate_flags,
                                compute_dtype=jnp.float32)
    outs = [jax.block_until_ready(o) for o in outs]
    for o, (params, ks) in zip(outs, enabled):
        ref = gate_reference(x, params, ks)
        assert o.shape == (N, 1, L), o.shape
        np.testing.assert_allclose(np.asarray(o), np.asarray(ref),
                                   rtol=1e-4, atol=1e-4)

    # bf16 operand path (v6e/v7x MXU recommendation), f32 accumulation: looser tol.
    outs_bf = convnet_path_forward(x, all_params, kernel_sizes, gate_flags,
                                   compute_dtype=jnp.bfloat16)
    outs_bf = [jax.block_until_ready(o) for o in outs_bf]
    for o, (params, ks) in zip(outs_bf, enabled):
        ref = gate_reference(x, params, ks)
        np.testing.assert_allclose(np.asarray(o), np.asarray(ref),
                                   rtol=3e-2, atol=3e-2)

    print("KERNEL_OK")
</pallas_src>

<mosaic_0001>
module attributes {stable_mosaic.version = 11 : i64} {
  func.func @_fused_gates_kernel(%arg0: i32, %arg1: memref<1x4x16xf32, #tpu.memory_space<vmem>>, %arg2: memref<24x28xf32, #tpu.memory_space<vmem>>, %arg3: memref<24x1xf32, #tpu.memory_space<vmem>>, %arg4: memref<24x3xf32, #tpu.memory_space<vmem>>, %arg5: memref<3x1xf32, #tpu.memory_space<vmem>>, %arg6: memref<1x3x16xf32, #tpu.memory_space<vmem>>, %arg7: memref<24x18xf32, #tpu.memory_space<vmem>>) attributes {dimension_semantics = [#tpu.dimension_semantics<parallel>], iteration_bounds = array<i64: 2>, scalar_prefetch = 0 : i64, scratch_operands = 1 : i64, tpu.core_type = #tpu.core_type<tc>, window_params = [{transform_indices = @transform_0, window_bounds = array<i64: 1, 4, 16>}, {pipeline_mode = #tpu.pipeline_mode<synchronous>, transform_indices = @transform_1, window_bounds = array<i64: 24, 28>}, {pipeline_mode = #tpu.pipeline_mode<synchronous>, transform_indices = @transform_2, window_bounds = array<i64: 24, 1>}, {pipeline_mode = #tpu.pipeline_mode<synchronous>, transform_indices = @transform_3, window_bounds = array<i64: 24, 3>}, {pipeline_mode = #tpu.pipeline_mode<synchronous>, transform_indices = @transform_4, window_bounds = array<i64: 3, 1>}, {transform_indices = @transform_5, window_bounds = array<i64: 1, 3, 16>}]} {
    %c0 = arith.constant 0 : index
    %c0_0 = arith.constant 0 : index
    %c0_1 = arith.constant 0 : index
    %0 = vector.load %arg1[%c0, %c0_0, %c0_1] : memref<1x4x16xf32, #tpu.memory_space<vmem>>, vector<1x4x16xf32>
    %1 = vector.shape_cast %0 : vector<1x4x16xf32> to vector<4x16xf32>
    %cst = arith.constant 0.000000e+00 : f32
    %2 = vector.broadcast %cst : f32 to vector<4x4xf32>
    %3 = tpu.concatenate %2, %1, %2 in 1 : vector<4x4xf32>, vector<4x16xf32>, vector<4x4xf32> -> vector<4x24xf32>
    %4 = vector.extract_strided_slice %3 {offsets = [0, 0], sizes = [4, 18], strides = [1, 1]} : vector<4x24xf32> to vector<4x18xf32>
    %5 = vector.extract_strided_slice %3 {offsets = [0, 1], sizes = [4, 18], strides = [1, 1]} : vector<4x24xf32> to vector<4x18xf32>
    %6 = vector.extract_strided_slice %3 {offsets = [0, 2], sizes = [4, 18], strides = [1, 1]} : vector<4x24xf32> to vector<4x18xf32>
    %7 = vector.extract_strided_slice %3 {offsets = [0, 3], sizes = [4, 18], strides = [1, 1]} : vector<4x24xf32> to vector<4x18xf32>
    %8 = vector.extract_strided_slice %3 {offsets = [0, 4], sizes = [4, 18], strides = [1, 1]} : vector<4x24xf32> to vector<4x18xf32>
    %9 = vector.extract_strided_slice %3 {offsets = [0, 5], sizes = [4, 18], strides = [1, 1]} : vector<4x24xf32> to vector<4x18xf32>
    %10 = vector.extract_strided_slice %3 {offsets = [0, 6], sizes = [4, 18], strides = [1, 1]} : vector<4x24xf32> to vector<4x18xf32>
    %11 = tpu.concatenate %4, %5, %6, %7, %8, %9, %10 in 0 : vector<4x18xf32>, vector<4x18xf32>, vector<4x18xf32>, vector<4x18xf32>, vector<4x18xf32>, vector<4x18xf32>, vector<4x18xf32> -> vector<28x18xf32>
    %c0_2 = arith.constant 0 : index
    %c0_3 = arith.constant 0 : index
    %12 = vector.load %arg2[%c0_2, %c0_3] : memref<24x28xf32, #tpu.memory_space<vmem>>, vector<24x28xf32>
    %cst_4 = arith.constant dense<0.000000e+00> : vector<24x18xf32>
    %13 = tpu.matmul %12, %11, %cst_4 {dimension_numbers = #tpu.dot_dimension_numbers<[1], [0], [0], [1], [0, 0, 1, 1], [], []>} : vector<24x28xf32>, vector<28x18xf32>, vector<24x18xf32> -> vector<24x18xf32>
    %14 = tpu.iota {dimensions = array<i32: 1>} : vector<1x18xi32>
    %c1_i32 = arith.constant 1 : i32
    %15 = vector.broadcast %c1_i32 : i32 to vector<1x18xi32>
    %16 = arith.cmpi sge, %14, %15 : vector<1x18xi32>
    %c16_i32 = arith.constant 16 : i32
    %17 = vector.broadcast %c16_i32 : i32 to vector<1x18xi32>
    %18 = arith.cmpi sle, %14, %17 : vector<1x18xi32>
    %19 = arith.andi %16, %18 : vector<1x18xi1>
    %c0_5 = arith.constant 0 : index
    %c0_6 = arith.constant 0 : index
    %20 = vector.load %arg3[%c0_5, %c0_6] : memref<24x1xf32, #tpu.memory_space<vmem>>, vector<24x1xf32>
    %21 = vector.broadcast %20 : vector<24x1xf32> to vector<24x18xf32>
    %22 = arith.addf %13, %21 : vector<24x18xf32>
    %cst_7 = arith.constant 0.000000e+00 : f32
    %23 = vector.broadcast %cst_7 : f32 to vector<24x18xf32>
    %24 = arith.maximumf %22, %23 : vector<24x18xf32>
    %cst_8 = arith.constant 0.000000e+00 : f32
    %25 = vector.shape_cast %19 : vector<1x18xi1> to vector<1x18xi1>
    %26 = vector.broadcast %25 : vector<1x18xi1> to vector<24x18xi1>
    %27 = vector.broadcast %cst_8 : f32 to vector<24x18xf32>
    %28 = arith.select %26, %24, %27 : vector<24x18xi1>, vector<24x18xf32>
    %c0_9 = arith.constant 0 : index
    %c0_10 = arith.constant 0 : index
    %29 = vector.load %arg7[%c0_9, %c0_10] : memref<24x18xf32, #tpu.memory_space<vmem>>, vector<24x18xf32>
    tpu.vector_store %arg7[%c0_9, %c0_10], %28 {strides = array<i32>} : memref<24x18xf32, #tpu.memory_space<vmem>>, vector<24x18xf32>,
    %c0_11 = arith.constant 0 : index
    %c0_12 = arith.constant 0 : index
    %30 = vector.load %arg7[%c0_11, %c0_12] : memref<24x18xf32, #tpu.memory_space<vmem>>, vector<24x16xf32>
    %c0_13 = arith.constant 0 : index
    %c0_14 = arith.constant 0 : index
    %31 = vector.load %arg4[%c0_13, %c0_14] : memref<24x3xf32, #tpu.memory_space<vmem>>, vector<24x1xf32>
    %32 = vector.broadcast %31 : vector<24x1xf32> to vector<24x16xf32>
    %33 = arith.mulf %30, %32 : vector<24x16xf32>
    %c0_15 = arith.constant 0 : index
    %c1 = arith.constant 1 : index
    %34 = vector.load %arg7[%c0_15, %c1] : memref<24x18xf32, #tpu.memory_space<vmem>>, vector<24x16xf32>
    %c0_16 = arith.constant 0 : index
    %c1_17 = arith.constant 1 : index
    %35 = vector.load %arg4[%c0_16, %c1_17] : memref<24x3xf32, #tpu.memory_space<vmem>>, vector<24x1xf32>
    %36 = vector.broadcast %35 : vector<24x1xf32> to vector<24x16xf32>
    %37 = arith.mulf %34, %36 : vector<24x16xf32>
    %38 = arith.addf %33, %37 : vector<24x16xf32>
    %c0_18 = arith.constant 0 : index
    %c2 = arith.constant 2 : index
    %39 = vector.load %arg7[%c0_18, %c2] : memref<24x18xf32, #tpu.memory_space<vmem>>, vector<24x16xf32>
    %c0_19 = arith.constant 0 : index
    %c2_20 = arith.constant 2 : index
    %40 = vector.load %arg4[%c0_19, %c2_20] : memref<24x3xf32, #tpu.memory_space<vmem>>, vector<24x1xf32>
    %41 = vector.broadcast %40 : vector<24x1xf32> to vector<24x16xf32>
    %42 = arith.mulf %39, %41 : vector<24x16xf32>
    %43 = arith.addf %38, %42 : vector<24x16xf32>
    %44 = vector.shape_cast %43 : vector<24x16xf32> to vector<3x8x16xf32>
    %cst_21 = arith.constant dense<0.000000e+00> : vector<3x16xf32>
    %45 = vector.multi_reduction <add>, %44, %cst_21 [1] : vector<3x8x16xf32> to vector<3x16xf32>
    %c0_22 = arith.constant 0 : index
    %c0_23 = arith.constant 0 : index
    %46 = vector.load %arg5[%c0_22, %c0_23] : memref<3x1xf32, #tpu.memory_space<vmem>>, vector<3x1xf32>
    %47 = vector.broadcast %46 : vector<3x1xf32> to vector<3x16xf32>
    %48 = arith.addf %45, %47 : vector<3x16xf32>
    %cst_24 = arith.constant 0.000000e+00 : f32
    %49 = vector.broadcast %cst_24 : f32 to vector<3x16xf32>
    %50 = arith.maximumf %48, %49 : vector<3x16xf32>
    %c0_25 = arith.constant 0 : index
    %c0_26 = arith.constant 0 : index
    %c0_27 = arith.constant 0 : index
    %51 = vector.load %arg6[%c0_25, %c0_26, %c0_27] : memref<1x3x16xf32, #tpu.memory_space<vmem>>, vector<1x3x16xf32>
    %52 = vector.shape_cast %51 : vector<1x3x16xf32> to vector<3x16xf32>
    %53 = vector.shape_cast %50 : vector<3x16xf32> to vector<1x3x16xf32>
    tpu.vector_store %arg6[%c0_25, %c0_26, %c0_27], %53 {strides = array<i32>} : memref<1x3x16xf32, #tpu.memory_space<vmem>>, vector<1x3x16xf32>,
    return
  }
  func.func @transform_0(%arg0: i32) -> (i32, i32, i32) {
    %c0_i32 = arith.constant 0 : i32
    %c0_i32_0 = arith.constant 0 : i32
    %c0_i32_1 = arith.constant 0 : i32
    return %arg0, %c0_i32, %c0_i32_0 : i32, i32, i32
  }
  func.func @transform_1(%arg0: i32) -> (i32, i32) {
    %c0_i32 = arith.constant 0 : i32
    %c0_i32_0 = arith.constant 0 : i32
    %c0_i32_1 = arith.constant 0 : i32
    return %c0_i32, %c0_i32_0 : i32, i32
  }
  func.func @transform_2(%arg0: i32) -> (i32, i32) {
    %c0_i32 = arith.constant 0 : i32
    %c0_i32_0 = arith.constant 0 : i32
    %c0_i32_1 = arith.constant 0 : i32
    return %c0_i32, %c0_i32_0 : i32, i32
  }
  func.func @transform_3(%arg0: i32) -> (i32, i32) {
    %c0_i32 = arith.constant 0 : i32
    %c0_i32_0 = arith.constant 0 : i32
    %c0_i32_1 = arith.constant 0 : i32
    return %c0_i32, %c0_i32_0 : i32, i32
  }
  func.func @transform_4(%arg0: i32) -> (i32, i32) {
    %c0_i32 = arith.constant 0 : i32
    %c0_i32_0 = arith.constant 0 : i32
    %c0_i32_1 = arith.constant 0 : i32
    return %c0_i32, %c0_i32_0 : i32, i32
  }
  func.func @transform_5(%arg0: i32) -> (i32, i32, i32) {
    %c0_i32 = arith.constant 0 : i32
    %c0_i32_0 = arith.constant 0 : i32
    %c0_i32_1 = arith.constant 0 : i32
    return %arg0, %c0_i32, %c0_i32_0 : i32, i32, i32
  }
}

</mosaic_0001>

<llo_original>
// kernel: tpu_custom_call.1
$region0: #{tpu_custom_call.1}
  #allocation0 [shape = 'u32[]', space=smem, size = 0x4, offset = 0x4, fixed_abs, tag = 'smem constant byte address 0x4 - core index']
  #allocation1 [shape = 'u32[144,128]{1,0:T(1,128)}', space=vmem, size = 0x12000, scoped, tag = 'internal scratch']
  #allocation2 [shape = 'f32[24,18]{1,0:T(8,128)}', space=vmem, size = 0x3000, scoped, tag = 'scratch operand']
  %s0 = inlined_call_operand.vmem [shape: f32[2,4,16], index: 0, kind: input, shape index: {}]
  %s1 = inlined_call_operand.vmem [shape: f32[24,28], index: 1, kind: input, shape index: {}]
  %s2 = inlined_call_operand.vmem [shape: f32[24,1], index: 2, kind: input, shape index: {}]
  %s3 = inlined_call_operand.vmem [shape: f32[24,3], index: 3, kind: input, shape index: {}]
  %s4 = inlined_call_operand.vmem [shape: f32[3,1], index: 4, kind: input, shape index: {}]
  %s5 = inlined_call_operand.vmem [shape: f32[2,3,16], index: 5, kind: output, shape index: {}]
  %s6 = sld [smem:[#allocation0]]
  $region53: #{tpu_custom_call.1} parent=0
    _
  %s8 = ssub.s32 1, %s6
  %s9 = scalar_select 0, %s8, %s6
  loop: start=0, step=1, limit=4
  $region2: #{tpu_custom_call.1} parent=0 // loop_pre_header
    _
  $region3: #{tpu_custom_call.1} parent=0 // loop_header
    %s11 = sphi 0, %s15
    %p12 = scmp.ge.s32.totalorder %s11, 4
    %s21 = sphi 0, %s23
    %s24 = sphi 0, %s21
    %s25 = sphi 0, %s24
    %s41 = sphi 0, %s25
    %s45 = sphi 0, %s45
    %s47 = sphi 0, %s45
    %s48 = sphi 0, %s47
    %s62 = sphi 0, %s48
    %s66 = sphi 0, %s66
    %s68 = sphi 0, %s66
    %s69 = sphi 0, %s68
    %s83 = sphi 0, %s69
    %s87 = sphi 0, %s87
    %s89 = sphi 0, %s87
    %s90 = sphi 0, %s89
    %s104 = sphi 0, %s90
    %s108 = sphi 0, %s108
    %s110 = sphi 0, %s108
    %s111 = sphi 0, %s110
    %s125 = sphi 0, %s111
    %s131 = sphi 0, %s133
    %s134 = sphi 0, %s131
    %s135 = sphi 0, %s134
    %s151 = sphi 0, %s135
  $region4: #{tpu_custom_call.1} parent=0 // loop_header_branch
    %14 = sbr.rel (%p12) target = $region8
  $region5: #{tpu_custom_call.1} parent=0 // loop_body
    %s16 = ssub.s32 %s11, 1
    %s17 = ssub.s32 %s11, 2
    %s18 = sadd.s32 %s11, 1
    %s19 = ssub.s32 %s11, %s18
    %p20 = scmp.eq.s32.totalorder %s19, 0
    %s22 = sadd.s32 %s21, 1
    %s23 = scalar_select %p20, %s21, %s22
    %p26 = pneg %p20
    %p27 = scmp.eq.s32.totalorder %s11, 1
    %p28 = por %p26, %p27
    %p29 = scmp.ne.s32.totalorder %s21, %s24
    %p30 = scmp.eq.s32.totalorder %s11, 0
    %p31 = por %p29, %p30
    %p32 = scmp.ne.s32.totalorder %s21, %s24
    %p33 = scmp.eq.s32.totalorder %s16, 1
    %p34 = por %p32, %p33
    %p35 = scmp.ne.s32.totalorder %s24, %s25
    %p36 = scmp.eq.s32.totalorder %s16, 0
    %p37 = por %p35, %p36
    %p38 = scmp.ne.s32.totalorder %s24, %s25
    %p39 = scmp.eq.s32.totalorder %s17, 1
    %p40 = por %p38, %p39
    %p42 = scmp.ne.s32.totalorder %s25, %s41
    %p43 = scmp.eq.s32.totalorder %s17, 0
    %p44 = por %p42, %p43
    %s46 = sadd.s32 %s45, 1
    %p49 = scmp.eq.s32.totalorder %s11, 1
    %p50 = scmp.ne.s32.totalorder %s45, %s47
    %p51 = scmp.eq.s32.totalorder %s11, 0
    %p52 = por %p50, %p51
    %p53 = scmp.ne.s32.totalorder %s45, %s47
    %p54 = scmp.eq.s32.totalorder %s16, 1
    %p55 = por %p53, %p54
    %p56 = scmp.ne.s32.totalorder %s47, %s48
    %p57 = scmp.eq.s32.totalorder %s16, 0
    %p58 = por %p56, %p57
    %p59 = scmp.ne.s32.totalorder %s47, %s48
    %p60 = scmp.eq.s32.totalorder %s17, 1
    %p61 = por %p59, %p60
    %p63 = scmp.ne.s32.totalorder %s48, %s62
    %p64 = scmp.eq.s32.totalorder %s17, 0
    %p65 = por %p63, %p64
    %s67 = sadd.s32 %s66, 1
    %p70 = scmp.eq.s32.totalorder %s11, 1
    %p71 = scmp.ne.s32.totalorder %s66, %s68
    %p72 = scmp.eq.s32.totalorder %s11, 0
    %p73 = por %p71, %p72
    %p74 = scmp.ne.s32.totalorder %s66, %s68
    %p75 = scmp.eq.s32.totalorder %s16, 1
    %p76 = por %p74, %p75
    %p77 = scmp.ne.s32.totalorder %s68, %s69
    %p78 = scmp.eq.s32.totalorder %s16, 0
    %p79 = por %p77, %p78
    %p80 = scmp.ne.s32.totalorder %s68, %s69
    %p81 = scmp.eq.s32.totalorder %s17, 1
    %p82 = por %p80, %p81
    %p84 = scmp.ne.s32.totalorder %s69, %s83
    %p85 = scmp.eq.s32.totalorder %s17, 0
    %p86 = por %p84, %p85
    %s88 = sadd.s32 %s87, 1
    %p91 = scmp.eq.s32.totalorder %s11, 1
    %p92 = scmp.ne.s32.totalorder %s87, %s89
    %p93 = scmp.eq.s32.totalorder %s11, 0
    %p94 = por %p92, %p93
    %p95 = scmp.ne.s32.totalorder %s87, %s89
    %p96 = scmp.eq.s32.totalorder %s16, 1
    %p97 = por %p95, %p96
    %p98 = scmp.ne.s32.totalorder %s89, %s90
    %p99 = scmp.eq.s32.totalorder %s16, 0
    %p100 = por %p98, %p99
    %p101 = scmp.ne.s32.totalorder %s89, %s90
    %p102 = scmp.eq.s32.totalorder %s17, 1
    %p103 = por %p101, %p102
    %p105 = scmp.ne.s32.totalorder %s90, %s104
    %p106 = scmp.eq.s32.totalorder %s17, 0
    %p107 = por %p105, %p106
    %s109 = sadd.s32 %s108, 1
    %p112 = scmp.eq.s32.totalorder %s11, 1
    %p113 = scmp.ne.s32.totalorder %s108, %s110
    %p114 = scmp.eq.s32.totalorder %s11, 0
    %p115 = por %p113, %p114
    %p116 = scmp.ne.s32.totalorder %s108, %s110
    %p117 = scmp.eq.s32.totalorder %s16, 1
    %p118 = por %p116, %p117
    %p119 = scmp.ne.s32.totalorder %s110, %s111
    %p120 = scmp.eq.s32.totalorder %s16, 0
    %p121 = por %p119, %p120
    %p122 = scmp.ne.s32.totalorder %s110, %s111
    %p123 = scmp.eq.s32.totalorder %s17, 1
    %p124 = por %p122, %p123
    %p126 = scmp.ne.s32.totalorder %s111, %s125
    %p127 = scmp.eq.s32.totalorder %s17, 0
    %p128 = por %p126, %p127
    %s129 = ssub.s32 %s11, %s18
    %p130 = scmp.eq.s32.totalorder %s129, 0
    %s132 = sadd.s32 %s131, 1
    %s133 = scalar_select %p130, %s131, %s132
    %p136 = pneg %p130
    %p137 = scmp.eq.s32.totalorder %s11, 1
    %p138 = por %p136, %p137
    %p139 = scmp.ne.s32.totalorder %s131, %s134
    %p140 = scmp.eq.s32.totalorder %s11, 0
    %p141 = por %p139, %p140
    %p142 = scmp.ne.s32.totalorder %s131, %s134
    %p143 = scmp.eq.s32.totalorder %s16, 1
    %p144 = por %p142, %p143
    %p145 = scmp.ne.s32.totalorder %s134, %s135
    %p146 = scmp.eq.s32.totalorder %s16, 0
    %p147 = por %p145, %p146
    %p148 = scmp.ne.s32.totalorder %s134, %s135
    %p149 = scmp.eq.s32.totalorder %s17, 1
    %p150 = por %p148, %p149
    %p152 = scmp.ne.s32.totalorder %s135, %s151
    %p153 = scmp.eq.s32.totalorder %s17, 0
    %p154 = por %p152, %p153
    %p155 = scmp.le.s32.totalorder 1, %s11
    %p156 = scmp.lt.s32.totalorder %s11, 3
    %p157 = pnand %p155, %p156
    %p158 = pneg %p157
    // Predicated region
    $region9: #{tpu_custom_call.1} parent=5 // pred_check
      _
    $region10: #{tpu_custom_call.1} parent=5 // pred_check_branch
      %160 = sbr.rel (%p157) target = $region12
    $region11: #{tpu_custom_call.1} parent=5 // pred_region
      %s161 = ssub.s32 %s11, 1
      // Predicated region
      $region13: #{tpu_custom_call.1} parent=11 // pred_check
        %p162 = pneg %p58
      $region14: #{tpu_custom_call.1} parent=11 // pred_check_branch
        %164 = sbr.rel (%p162) target = $region16
      $region15: #{tpu_custom_call.1} parent=11 // pred_region
        _
      $region16: #{tpu_custom_call.1} parent=11 // pred_fallthru
        _
      // Predicated region
      $region17: #{tpu_custom_call.1} parent=11 // pred_check
        %p165 = pneg %p79
      $region18: #{tpu_custom_call.1} parent=11 // pred_check_branch
        %167 = sbr.rel (%p165) target = $region20
      $region19: #{tpu_custom_call.1} parent=11 // pred_region
        _
      $region20: #{tpu_custom_call.1} parent=11 // pred_fallthru
        _
      // Predicated region
      $region21: #{tpu_custom_call.1} parent=11 // pred_check
        %p168 = pneg %p100
      $region22: #{tpu_custom_call.1} parent=11 // pred_check_branch
        %170 = sbr.rel (%p168) target = $region24
      $region23: #{tpu_custom_call.1} parent=11 // pred_region
        _
      $region24: #{tpu_custom_call.1} parent=11 // pred_fallthru
        _
      // Predicated region
      $region25: #{tpu_custom_call.1} parent=11 // pred_check
        %p171 = pneg %p121
      $region26: #{tpu_custom_call.1} parent=11 // pred_check_branch
        %173 = sbr.rel (%p171) target = $region28
      $region27: #{tpu_custom_call.1} parent=11 // pred_region
        _
      $region28: #{tpu_custom_call.1} parent=11 // pred_fallthru
        _
    $region12: #{tpu_custom_call.1} parent=5 // pred_fallthru
      _
    %p174 = scmp.lt.s32.totalorder %s11, 2
    // Predicated region
    $region29: #{tpu_custom_call.1} parent=5 // pred_check
      %p175 = pneg %p174
    $region30: #{tpu_custom_call.1} parent=5 // pred_check_branch
      %177 = sbr.rel (%p175) target = $region32
    $region31: #{tpu_custom_call.1} parent=5 // pred_region
      // Predicated region
      $region33: #{tpu_custom_call.1} parent=31 // pred_check
        %p178 = pneg %p31
      $region34: #{tpu_custom_call.1} parent=31 // pred_check_branch
        %180 = sbr.rel (%p178) target = $region36
      $region35: #{tpu_custom_call.1} parent=31 // pred_region
        %p181 = scmp.lt.s32.totalorder %s11, 1
        %s182 = scalar_select %p181, %s11, 1
        %s183 = smul.addr %s182, 4
        %s184 = scalar_lea.vmem %s0, %s183
      $region36: #{tpu_custom_call.1} parent=31 // pred_fallthru
        _
    $region32: #{tpu_custom_call.1} parent=5 // pred_fallthru
      _
    %p185 = scmp.le.s32.totalorder 1, %s11
    %p186 = scmp.lt.s32.totalorder %s11, 3
    %p187 = pnand %p185, %p186
    %p188 = pneg %p187
    // Predicated region
    $region37: #{tpu_custom_call.1} parent=5 // pred_check
      _
    $region38: #{tpu_custom_call.1} parent=5 // pred_check_branch
      %190 = sbr.rel (%p187) target = $region40
    $region39: #{tpu_custom_call.1} parent=5 // pred_region
      %s191 = ssub.s32 %s11, 1
      %p192 = scmp.lt.s32.totalorder %s16, 1
      %s193 = scalar_select %p192, %s16, 1
      %s194 = smul.addr %s193, 4
      %s195 = scalar_lea.vmem %s0, %s194
      %p196 = pneg %p37
      %p197 = pneg %p34
      %p198 = pneg %p58
      %p199 = pneg %p55
      %p200 = pneg %p79
      %p201 = pneg %p76
      %p202 = pneg %p100
      %p203 = pneg %p97
      %p204 = pneg %p121
      %p205 = pneg %p118
      %p206 = pneg %p147
      %p207 = pneg %p144
      %p208 = scmp.lt.s32.totalorder %s16, 1
      %s209 = scalar_select %p208, %s16, 1
      %s210 = smul.addr %s209, 4
      %s211 = scalar_lea.vmem %s5, %s210
      %p212 = scmp.lt.s32.totalorder %s16, 1
      %s213 = scalar_select %p212, %s16, 1
      %s214 = smul.addr %s213, 4
      %s215 = scalar_lea.vmem %s0, %s214
      %p216 = scmp.lt.s32.totalorder %s16, 1
      %s217 = scalar_select %p216, %s16, 1
      %s218 = smul.addr %s217, 4
      %s219 = scalar_lea.vmem %s5, %s218
      %v220 = vld [vmem:[%s215] sm:$0xf]
      %222 = vrot.lane.b32.xlu0 %v220, 4
      %v223 = vpop.permute.xlu0 %222
      %vm225 = vcmask 31744
      %v226 = vsel %vm225, 0.0, %v223
      %vm227 = vcmask 162816
      %v228 = vsel %vm227, %v226, 0.0
      %v230 = vrot.slane %v228, 4
      %231 = vrot.lane.b32.xlu0 %v230, 127
      %v232 = vpop.permute.xlu0 %231
      %234 = vrot.lane.b32.xlu0 %v228, 126
      %v235 = vpop.permute.xlu0 %234
      %237 = vrot.lane.b32.xlu0 %v230, 125
      %v238 = vpop.permute.xlu0 %237
      %240 = vrot.lane.b32.xlu0 %v228, 124
      %v241 = vpop.permute.xlu0 %240
      %243 = vrot.lane.b32.xlu0 %v230, 123
      %v244 = vpop.permute.xlu0 %243
      %246 = vrot.lane.b32.xlu0 %v228, 122
      %v247 = vpop.permute.xlu0 %246
      %vm248 = vcmask 1043456
      %v249 = vsel %vm248, %v228, %v232
      %v250 = vsel %vm248, %v235, %v238
      %v251 = vsel %vm248, %v241, %v244
      %v252 = vld [vmem:[%s1] sm:$0xff]
      %v253 = vld [vmem:[%s1 + $0x8] sm:$0xff]
      %v254 = vld [vmem:[%s1 + $0x10] sm:$0xff]
      %v255 = vlaneseq
      %v256 = vand.u32 %v255, 127
      %vm257 = vcmp.ge.s32.totalorder %v256, 1
      %vm258 = vcmp.le.s32.totalorder %v256, 16
      %vm259 = vmand %vm257, %vm258
      %v260 = vld [vmem:[%s2] sm:$0xff]
      %v261 = vld [vmem:[%s2 + $0x8] sm:$0xff]
      %v262 = vld [vmem:[%s2 + $0x10] sm:$0xff]
      %264 = vset.pattern.permute.xlu0 0
      %265 = vperm.xlu0 %264, %v260
      %v266 = vpop.permute.xlu0 %265
      %269 = vset.pattern.permute.xlu0 0
      %270 = vperm.xlu0 %269, %v261
      %v271 = vpop.permute.xlu0 %270
      %274 = vset.pattern.permute.xlu0 0
      %275 = vperm.xlu0 %274, %v262
      %v276 = vpop.permute.xlu0 %275
      %vm278 = vcmask 228352
      %v280 = vsel %vm278, %v252, 0
      %v283 = vsel %vm278, %v253, 0
      %v286 = vsel %vm278, %v254, 0
      %v288 = vsel %vm248, %v247, 0
      %290 = vmatprep.subr.mxu0 0.0
      %291 = vmatpush1.msra.mxu0 %v249
      %292 = vmatprep.subr.mxu0 0.0
      %293 = vmatpush1.msra.mxu0 %v250
      %294 = vmatprep.subr.mxu0 0.0
      %295 = vmatpush1.msra.mxu0 %v251
      %296 = vmatprep.subr.mxu0 0.0
      %297 = vmatpush1.msra.mxu0 %v288
      %298 = vmatprep.subr.mxu0 0.0
      %299 = vmatpush1.msra.mxu0 0.0
      %300 = vmatprep.subr.mxu0 0.0
      %301 = vmatpush1.msra.mxu0 0.0
      %302 = vmatprep.subr.mxu0 0.0
      %303 = vmatpush1.msra.mxu0 0.0
      %304 = vmatprep.subr.mxu0 0.0
      %305 = vmatpush1.msra.mxu0 0.0
      %306 = vmatprep.subr.mxu0 0.0
      %307 = vmatpush1.msra.mxu0 0.0
      %308 = vmatprep.subr.mxu0 0.0
      %309 = vmatpush1.msra.mxu0 0.0
      %310 = vmatprep.subr.mxu0 0.0
      %311 = vmatpush1.msra.mxu0 0.0
      %312 = vmatprep.subr.mxu0 0.0
      %313 = vmatpush1.msra.mxu0 0.0
      %314 = vmatprep.subr.mxu0 0.0
      %315 = vmatpush1.msra.mxu0 0.0
      %316 = vmatprep.subr.mxu0 0.0
      %317 = vmatpush1.msra.mxu0 0.0
      %318 = vmatprep.subr.mxu0 0.0
      %319 = vmatpush1.msra.mxu0 0.0
      %320 = vmatprep.subr.mxu0 0.0
      %321 = vmatpush1.msra.mxu0 0.0
      %322 = vmatprep.subr.mxu0 0.0
      %323 = vmatpush1.msra.mxu0 0.0
      %324 = vmatprep.subr.mxu0 0.0
      %325 = vmatpush1.msra.mxu0 0.0
      %326 = vmatprep.subr.mxu0 0.0
      %327 = vmatpush1.msra.mxu0 0.0
      %328 = vmatprep.subr.mxu0 0.0
      %329 = vmatpush1.msra.mxu0 0.0
      %330 = vmatprep.subr.mxu0 0.0
      %331 = vmatpush1.msra.mxu0 0.0
      %332 = vmatprep.subr.mxu0 0.0
      %333 = vmatpush1.msra.mxu0 0.0
      %334 = vmatprep.subr.mxu0 0.0
      %335 = vmatpush1.msra.mxu0 0.0
      %336 = vmatprep.subr.mxu0 0.0
      %337 = vmatpush1.msra.mxu0 0.0
      %338 = vmatprep.subr.mxu0 0.0
      %339 = vmatpush1.msra.mxu0 0.0
      %340 = vmatprep.subr.mxu0 0.0
      %341 = vmatpush1.msra.mxu0 0.0
      %342 = vmatprep.subr.mxu0 0.0
      %343 = vmatpush1.msra.mxu0 0.0
      %344 = vmatprep.subr.mxu0 0.0
      %345 = vmatpush1.msra.mxu0 0.0
      %346 = vmatprep.subr.mxu0 0.0
      %347 = vmatpush1.msra.mxu0 0.0
      %348 = vmatprep.subr.mxu0 0.0
      %349 = vmatpush1.msra.mxu0 0.0
      %350 = vmatprep.subr.mxu0 0.0
      %351 = vmatpush1.msra.mxu0 0.0
      %352 = vmatprep.subr.mxu0 0.0
      %353 = vmatpush1.msra.mxu0 0.0
      %354 = vmatprep.mubr.f32.mxu0 0.0
      %355 = vmatmul.mubr.f32.gmra.mrb[0].mxu0 %v280
      %v356 = vpop.f32.mrb[0].mxu0
      %v357 = vadd.f32 %v266, %v356
      %v358 = vpop.f32.mrb[0].mxu0
      %359 = vmatprep.mubr.f32.mxu0 0.0
      %360 = vmatmul.mubr.f32.gmra.mrb[0].mxu0 %v283
      %v361 = vpop.f32.mrb[0].mxu0
      %v362 = vadd.f32 %v271, %v361
      %v363 = vpop.f32.mrb[0].mxu0
      %364 = vmatprep.mubr.f32.mxu0 0.0
      %365 = vmatmul.mubr.f32.gmra.mrb[0].mxu0 %v286
      %v366 = vpop.f32.mrb[0].mxu0
      %v367 = vadd.f32 %v276, %v366
      %v368 = vpop.f32.mrb[0].mxu0
      %369 = vdwg.mxu0
      %v370 = vmax.f32 %v357, 0.0
      %v371 = vmax.f32 %v362, 0.0
      %v372 = vmax.f32 %v367, 0.0
      %v373 = vsel %vm259, 1, 0
      %vm374 = vcmp.eq.s32.totalorder %v373, 1
      %v375 = vsel %vm374, %v370, 0.0
      %v376 = vsel %vm374, %v371, 0.0
      %v377 = vsel %vm374, %v372, 0.0
      %vm378 = vcmask 146432
      %379 = vst.msk [vmem:[#allocation2] sm:$0xff] %vm378, %v375
      %380 = vst.msk [vmem:[#allocation2 + $0x8] sm:$0xff] %vm378, %v376
      %381 = vst.msk [vmem:[#allocation2 + $0x10] sm:$0xff] %vm378, %v377
      %v382 = vld [vmem:[#allocation2] sm:$0xff]
      %v383 = vld [vmem:[#allocation2 + $0x8] sm:$0xff]
      %v384 = vld [vmem:[#allocation2 + $0x10] sm:$0xff]
      %v385 = vld [vmem:[%s3] sm:$0xff]
      %v386 = vld [vmem:[%s3 + $0x8] sm:$0xff]
      %v387 = vld [vmem:[%s3 + $0x10] sm:$0xff]
      %389 = vset.pattern.permute.xlu0 0
      %390 = vperm.xlu0 %389, %v385
      %v391 = vpop.permute.xlu0 %390
      %394 = vset.pattern.permute.xlu0 0
      %395 = vperm.xlu0 %394, %v386
      %v396 = vpop.permute.xlu0 %395
      %399 = vset.pattern.permute.xlu0 0
      %400 = vperm.xlu0 %399, %v387
      %v401 = vpop.permute.xlu0 %400
      %v403 = vmul.f32 %v382, %v391
      %v404 = vmul.f32 %v383, %v396
      %v405 = vmul.f32 %v384, %v401
      %406 = vset.pattern.permute.xlu0 1
      %407 = vperm.xlu0 %406, %v385
      %v408 = vpop.permute.xlu0 %407
      %410 = vset.pattern.permute.xlu0 1
      %411 = vperm.xlu0 %410, %v386
      %v412 = vpop.permute.xlu0 %411
      %414 = vset.pattern.permute.xlu0 1
      %415 = vperm.xlu0 %414, %v387
      %v416 = vpop.permute.xlu0 %415
      %v418 = vmul.f32 %v382, %v408
      %v419 = vmul.f32 %v383, %v412
      %v420 = vmul.f32 %v384, %v416
      %424 = vrot.lane.b32.xlu0 %v418, 127
      %v425 = vpop.permute.xlu0 %424
      %426 = vrot.lane.b32.xlu0 %v419, 127
      %v427 = vpop.permute.xlu0 %426
      %428 = vrot.lane.b32.xlu0 %v420, 127
      %v429 = vpop.permute.xlu0 %428
      %v433 = vadd.f32 %v403, %v425
      %v434 = vadd.f32 %v404, %v427
      %v435 = vadd.f32 %v405, %v429
      %436 = vset.pattern.permute.xlu0 2
      %437 = vperm.xlu0 %436, %v385
      %v438 = vpop.permute.xlu0 %437
      %440 = vset.pattern.permute.xlu0 2
      %441 = vperm.xlu0 %440, %v386
      %v442 = vpop.permute.xlu0 %441
      %444 = vset.pattern.permute.xlu0 2
      %445 = vperm.xlu0 %444, %v387
      %v446 = vpop.permute.xlu0 %445
      %v448 = vmul.f32 %v382, %v438
      %v449 = vmul.f32 %v383, %v442
      %v450 = vmul.f32 %v384, %v446
      %454 = vrot.lane.b32.xlu0 %v448, 126
      %v455 = vpop.permute.xlu0 %454
      %456 = vrot.lane.b32.xlu0 %v449, 126
      %v457 = vpop.permute.xlu0 %456
      %458 = vrot.lane.b32.xlu0 %v450, 126
      %v459 = vpop.permute.xlu0 %458
      %v463 = vadd.f32 %v433, %v455
      %v464 = vadd.f32 %v434, %v457
      %v465 = vadd.f32 %v435, %v459
      %vm466 = vcmask 130048
      %v467 = vsel %vm466, %v463, 0.0
      %v468 = vrot.slane %v467, 4
      %v469 = vadd.f32 %v467, %v468
      %v470 = vrot.slane %v469, 2
      %v471 = vadd.f32 %v469, %v470
      %v472 = vrot.slane %v471, 1
      %v473 = vadd.f32 %v471, %v472
      %v474 = vsel %vm466, %v464, 0.0
      %v475 = vrot.slane %v474, 4
      %v476 = vadd.f32 %v474, %v475
      %v477 = vrot.slane %v476, 2
      %v478 = vadd.f32 %v476, %v477
      %v479 = vrot.slane %v478, 1
      %v480 = vadd.f32 %v478, %v479
      %v481 = vsel %vm466, %v465, 0.0
      %v482 = vrot.slane %v481, 4
      %v483 = vadd.f32 %v481, %v482
      %v484 = vrot.slane %v483, 2
      %v485 = vadd.f32 %v483, %v484
      %v486 = vrot.slane %v485, 1
      %v487 = vadd.f32 %v485, %v486
      %v488 = vld [vmem:[%s4] sm:$0x7]
      %490 = vset.pattern.permute.xlu0 0
      %491 = vperm.xlu0 %490, %v488
      %v492 = vpop.permute.xlu0 %491
      %v493 = vrot.slane %v492, 1
      %v494 = vrot.slane %v492, 2
      %v498 = vadd.f32 %v473, %v492
      %v499 = vadd.f32 %v480, %v493
      %v500 = vadd.f32 %v487, %v494
      %v501 = vmax.f32 %v498, 0.0
      %v502 = vmax.f32 %v499, 0.0
      %v503 = vmax.f32 %v500, 0.0
      %v507 = vrot.slane %v502, 7
      %vm508 = vcmask 1041409
      %v509 = vsel %vm508, %v507, %v501
      %v510 = vrot.slane %v503, 6
      %vm511 = vcmask 1042434
      %v512 = vsel %vm511, %v510, %v509
      %vm514 = vcmask 124928
      %515 = vst.msk [vmem:[%s219] sm:$0x7] %vm514, %v512
      %p516 = scmp.lt.s32.totalorder %s16, 1
      %s517 = scalar_select %p516, %s16, 1
      %s518 = smul.addr %s517, 4
      %s519 = scalar_lea.vmem %s5, %s518
      // Predicated region
      $region41: #{tpu_custom_call.1} parent=39 // pred_check
        %p520 = pneg %p144
      $region42: #{tpu_custom_call.1} parent=39 // pred_check_branch
        %522 = sbr.rel (%p520) target = $region44
      $region43: #{tpu_custom_call.1} parent=39 // pred_region
        _
      $region44: #{tpu_custom_call.1} parent=39 // pred_fallthru
        _
    $region40: #{tpu_custom_call.1} parent=5 // pred_fallthru
      _
    %p523 = scmp.le.s32.totalorder 2, %s11
    // Predicated region
    $region45: #{tpu_custom_call.1} parent=5 // pred_check
      %p524 = pneg %p523
    $region46: #{tpu_custom_call.1} parent=5 // pred_check_branch
      %526 = sbr.rel (%p524) target = $region48
    $region47: #{tpu_custom_call.1} parent=5 // pred_region
      %s527 = ssub.s32 %s11, 2
      // Predicated region
      $region49: #{tpu_custom_call.1} parent=47 // pred_check
        %p528 = pneg %p150
      $region50: #{tpu_custom_call.1} parent=47 // pred_check_branch
        %530 = sbr.rel (%p528) target = $region52
      $region51: #{tpu_custom_call.1} parent=47 // pred_region
        %p531 = scmp.lt.s32.totalorder %s17, 1
        %s532 = scalar_select %p531, %s17, 1
        %s533 = smul.addr %s532, 4
        %s534 = scalar_lea.vmem %s5, %s533
      $region52: #{tpu_custom_call.1} parent=47 // pred_fallthru
        _
    $region48: #{tpu_custom_call.1} parent=5 // pred_fallthru
      _
  $region6: #{tpu_custom_call.1} parent=0 // loop_footer
    %s15 = sadd.s32 1, %s11
  $region7: #{tpu_custom_call.1} parent=0 // loop_footer_branch
    %10 = sbr.rel target = $region3
  $region8: #{tpu_custom_call.1} parent=0 // loop_exit
    _

</llo_original>
